<compile_context>
chip_gen: v7x
topology: tpu7x:2x2x1
jax: 0.10.0
libtpu: 0.0.40
codegen_flags: <defaults>
</compile_context>

<pallas_src>
import functools

import jax
import jax.numpy as jnp
from jax.experimental import pallas as pl
from jax.experimental.pallas import tpu as pltpu


def layer_norm_kernel(x_ref, gamma_ref, beta_ref, o_ref, *, eps):
    # x_ref: (block_rows, N) tile in VMEM; gamma/beta: (1, N).
    x = x_ref[...].astype(jnp.float32)
    inv_n = 1.0 / x.shape[-1]
    # Two-pass moments (matches the Triton/PyTorch reference; avoids the
    # E[x^2] - mean^2 cancellation when |mean| >> std).
    mean = jnp.sum(x, axis=-1, keepdims=True) * inv_n
    diff = x - mean
    var = jnp.sum(diff * diff, axis=-1, keepdims=True) * inv_n
    x_norm = diff * jax.lax.rsqrt(var + eps)
    gamma = gamma_ref[...].astype(jnp.float32)   # (1, N), broadcasts over rows
    beta = beta_ref[...].astype(jnp.float32)     # (1, N)
    # TODO(synk): if a v7x bundle dump shows the 4 VALU slots saturating for
    # bf16 inputs, offload the two row reductions to the idle MXU
    # (x @ ones / (x*x) @ ones with preferred_element_type=f32).
    o_ref[...] = (x_norm * gamma + beta).astype(o_ref.dtype)


def _tpu_vmem_bytes():
    # Generation-aware physical VMEM (v5e/v6e: 128 MiB, v7x: 64 MiB per TC).
    try:
        info = pltpu.get_tpu_info()
        v = getattr(info, "vmem_capacity_bytes", None)
        if v:
            return int(v)
    except Exception:
        pass
    return 128 << 20  # conservative default (v5e/v6e class)


def _per_row_vmem_bytes(N, itemsize):
    # Double-buffered input tile + double-buffered output tile (native dtype)
    # plus ~3x full-f32 intermediates (x_f32, diff, fused output temp).
    return 4 * N * itemsize + 3 * N * 4


def _choose_block_rows(B, N, itemsize, vmem_bytes):
    # Sublane packing: 8 rows for 32-bit dtypes, 16 for bf16, 32 for int8-class.
    align = max(8, 32 // max(1, itemsize))
    # v7x-class (<=64 MiB VMEM, ~3.2 TB/s HBM): bigger tiles to amortize the
    # fixed ~0.35 us per-grid-step overhead. 128 MiB chips stay at ~4 MiB.
    is_v7x_class = vmem_bytes <= (64 << 20)
    target_tile_bytes = (8 << 20) if is_v7x_class else (4 << 20)

    rows = max(align, target_tile_bytes // max(1, N * itemsize))
    # Keep the full working set (I/O buffers + f32 temps) well inside physical
    # VMEM (~60% budget leaves room for Mosaic internal scratch).
    per_row = _per_row_vmem_bytes(N, itemsize)
    vmem_row_cap = max(align, int(vmem_bytes * 0.6) // max(1, per_row))
    rows = min(rows, vmem_row_cap, 4096)
    rows = max(align, (rows // align) * align)

    if rows >= B:
        # Never collapse a sizeable batch to grid=1: keep >=2 (ideally >=4)
        # grid steps so DMA/compute overlap and both TensorCores get work.
        if B >= 4 * align:
            rows = ((-(-B // 4)) + align - 1) // align * align
        elif B >= 2 * align:
            rows = ((-(-B // 2)) + align - 1) // align * align
        else:
            # Single block covering all rows: block dim == full array dim is
            # legal regardless of (8,128) divisibility; no edge masking.
            rows = B
    return rows


def triton_layer_norm(x, gamma, beta, eps=1e-5, block_rows=None):
    B, N = x.shape
    itemsize = jnp.dtype(x.dtype).itemsize
    vmem_bytes = _tpu_vmem_bytes()
    if block_rows is None:
        block_rows = _choose_block_rows(B, N, itemsize, vmem_bytes)
    block_rows = min(block_rows, B)
    grid_b = pl.cdiv(B, block_rows)

    gamma2d = gamma.reshape(1, N)
    beta2d = beta.reshape(1, N)

    # VMEM budget: double-buffered x/out tiles + f32 intermediates + params.
    per_row = _per_row_vmem_bytes(N, itemsize)
    param_itemsize = (jnp.dtype(gamma.dtype).itemsize
                      + jnp.dtype(beta.dtype).itemsize)
    param_bytes = 2 * N * param_itemsize + 2 * N * 4  # dbl-buffered + f32 copies
    est = block_rows * per_row + param_bytes
    # Ceiling: physical VMEM for this generation minus headroom (not a fixed
    # 64 MiB, which would artificially reject large-N configs on 128 MiB chips).
    ceiling = max(vmem_bytes - (8 << 20), 16 << 20)
    vmem_limit = int(min(max(est * 3 // 2, 32 << 20), ceiling))

    # TODO(synk): for very wide rows (N*itemsize*align exceeding the tile
    # budget) add a second 'arbitrary' grid axis over N with pl.when
    # init/finalize of s/sq accumulators instead of a full (block_rows, N) slab.
    # TODO(synk): if N is not a multiple of 128, consider a lane-dense reshape
    # in the wrapper to avoid masked vst.msk partial stores.
    kernel = functools.partial(layer_norm_kernel, eps=eps)
    out = pl.pallas_call(
        kernel,
        out_shape=jax.ShapeDtypeStruct((B, N), x.dtype),
        grid_spec=pltpu.PrefetchScalarGridSpec(
            num_scalar_prefetch=0,
            grid=(grid_b,),
            in_specs=[
                pl.BlockSpec((block_rows, N), lambda i: (i, 0)),
                pl.BlockSpec((1, N), lambda i: (0, 0)),
                pl.BlockSpec((1, N), lambda i: (0, 0)),
            ],
            out_specs=pl.BlockSpec((block_rows, N), lambda i: (i, 0)),
        ),
        compiler_params=pltpu.CompilerParams(
            dimension_semantics=("parallel",),
            vmem_limit_bytes=vmem_limit,
        ),
    )(x, gamma2d, beta2d)
    return out


if __name__ == "__main__":
    key = jax.random.PRNGKey(0)
    B, N = 4, 128
    x = jax.random.normal(key, (B, N), dtype=jnp.float32)

    # Parameters as in TritonLayerNorm.__init__ (deterministic).
    gamma = jnp.ones((N,), dtype=jnp.float32)
    beta = jnp.zeros((N,), dtype=jnp.float32)

    y = triton_layer_norm(x, gamma, beta, eps=1e-5)
    y = jax.block_until_ready(y)

    # Reference check in plain JAX (two-pass, same as PyTorch/Triton).
    mean = jnp.mean(x, axis=-1, keepdims=True)
    var = jnp.mean((x - mean) ** 2, axis=-1, keepdims=True)
    y_ref = (x - mean) / jnp.sqrt(var + 1e-5) * gamma + beta
    assert jnp.allclose(y, y_ref, atol=1e-4, rtol=1e-4), "mismatch vs reference"

    print("KERNEL_OK")
</pallas_src>

<mosaic_0001>
module attributes {stable_mosaic.version = 11 : i64} {
  func.func @layer_norm_kernel(%arg0: i32, %arg1: memref<4x128xf32, #tpu.memory_space<vmem>>, %arg2: memref<1x128xf32, #tpu.memory_space<vmem>>, %arg3: memref<1x128xf32, #tpu.memory_space<vmem>>, %arg4: memref<4x128xf32, #tpu.memory_space<vmem>>) attributes {dimension_semantics = [#tpu.dimension_semantics<parallel>], iteration_bounds = array<i64: 1>, scalar_prefetch = 0 : i64, scratch_operands = 0 : i64, tpu.core_type = #tpu.core_type<tc>, window_params = [{transform_indices = @transform_0, window_bounds = array<i64: 4, 128>}, {pipeline_mode = #tpu.pipeline_mode<synchronous>, transform_indices = @transform_1, window_bounds = array<i64: 1, 128>}, {pipeline_mode = #tpu.pipeline_mode<synchronous>, transform_indices = @transform_2, window_bounds = array<i64: 1, 128>}, {transform_indices = @transform_3, window_bounds = array<i64: 4, 128>}]} {
    %c0 = arith.constant 0 : index
    %c0_0 = arith.constant 0 : index
    %0 = vector.load %arg1[%c0, %c0_0] : memref<4x128xf32, #tpu.memory_space<vmem>>, vector<4x128xf32>
    %cst = arith.constant dense<0.000000e+00> : vector<4xf32>
    %1 = vector.multi_reduction <add>, %0, %cst [1] : vector<4x128xf32> to vector<4xf32>
    %2 = vector.shape_cast %1 : vector<4xf32> to vector<4x1xf32>
    %cst_1 = arith.constant 7.812500e-03 : f32
    %3 = vector.broadcast %cst_1 : f32 to vector<4x1xf32>
    %4 = arith.mulf %2, %3 : vector<4x1xf32>
    %5 = vector.broadcast %4 : vector<4x1xf32> to vector<4x128xf32>
    %6 = arith.subf %0, %5 : vector<4x128xf32>
    %7 = arith.mulf %6, %6 : vector<4x128xf32>
    %cst_2 = arith.constant dense<0.000000e+00> : vector<4xf32>
    %8 = vector.multi_reduction <add>, %7, %cst_2 [1] : vector<4x128xf32> to vector<4xf32>
    %9 = vector.shape_cast %8 : vector<4xf32> to vector<4x1xf32>
    %cst_3 = arith.constant 7.812500e-03 : f32
    %10 = vector.broadcast %cst_3 : f32 to vector<4x1xf32>
    %11 = arith.mulf %9, %10 : vector<4x1xf32>
    %cst_4 = arith.constant 9.99999974E-6 : f32
    %12 = vector.broadcast %cst_4 : f32 to vector<4x1xf32>
    %13 = arith.addf %11, %12 : vector<4x1xf32>
    %14 = math.rsqrt %13 : vector<4x1xf32>
    %15 = vector.broadcast %14 : vector<4x1xf32> to vector<4x128xf32>
    %16 = arith.mulf %6, %15 : vector<4x128xf32>
    %c0_5 = arith.constant 0 : index
    %c0_6 = arith.constant 0 : index
    %17 = vector.load %arg2[%c0_5, %c0_6] : memref<1x128xf32, #tpu.memory_space<vmem>>, vector<1x128xf32>
    %c0_7 = arith.constant 0 : index
    %c0_8 = arith.constant 0 : index
    %18 = vector.load %arg3[%c0_7, %c0_8] : memref<1x128xf32, #tpu.memory_space<vmem>>, vector<1x128xf32>
    %19 = vector.broadcast %17 : vector<1x128xf32> to vector<4x128xf32>
    %20 = arith.mulf %16, %19 : vector<4x128xf32>
    %21 = vector.broadcast %18 : vector<1x128xf32> to vector<4x128xf32>
    %22 = arith.addf %20, %21 : vector<4x128xf32>
    %c0_9 = arith.constant 0 : index
    %c0_10 = arith.constant 0 : index
    %23 = vector.load %arg4[%c0_9, %c0_10] : memref<4x128xf32, #tpu.memory_space<vmem>>, vector<4x128xf32>
    tpu.vector_store %arg4[%c0_9, %c0_10], %22 {strides = array<i32>} : memref<4x128xf32, #tpu.memory_space<vmem>>, vector<4x128xf32>,
    return
  }
  func.func @transform_0(%arg0: i32) -> (i32, i32) {
    %c0_i32 = arith.constant 0 : i32
    %c0_i32_0 = arith.constant 0 : i32
    return %arg0, %c0_i32 : i32, i32
  }
  func.func @transform_1(%arg0: i32) -> (i32, i32) {
    %c0_i32 = arith.constant 0 : i32
    %c0_i32_0 = arith.constant 0 : i32
    %c0_i32_1 = arith.constant 0 : i32
    return %c0_i32, %c0_i32_0 : i32, i32
  }
  func.func @transform_2(%arg0: i32) -> (i32, i32) {
    %c0_i32 = arith.constant 0 : i32
    %c0_i32_0 = arith.constant 0 : i32
    %c0_i32_1 = arith.constant 0 : i32
    return %c0_i32, %c0_i32_0 : i32, i32
  }
  func.func @transform_3(%arg0: i32) -> (i32, i32) {
    %c0_i32 = arith.constant 0 : i32
    %c0_i32_0 = arith.constant 0 : i32
    return %arg0, %c0_i32 : i32, i32
  }
}

</mosaic_0001>

<llo_original>
// kernel: tpu_custom_call.1
$region0: #{tpu_custom_call.1}
  #allocation0 [shape = 'u32[]', space=smem, size = 0x4, offset = 0x4, fixed_abs, tag = 'smem constant byte address 0x4 - core index']
  #allocation1 [shape = 'u32[144,128]{1,0:T(1,128)}', space=vmem, size = 0x12000, scoped, tag = 'internal scratch']
  %s0 = inlined_call_operand.hbm [shape: f32[4,128], index: 0, kind: input, shape index: {}]
  %s1 = inlined_call_operand.vmem [shape: f32[1,128], index: 1, kind: input, shape index: {}]
  %s2 = inlined_call_operand.vmem [shape: f32[1,128], index: 2, kind: input, shape index: {}]
  %s3 = inlined_call_operand.hbm [shape: f32[4,128], index: 3, kind: output, shape index: {}]
  %s4 = sld [smem:[#allocation0]]
  $region26: #{tpu_custom_call.1} parent=0
    _
  %s6 = ssub.s32 1, %s4
  %s7 = scalar_select 0, %s6, %s4
  $region1: #{tpu_custom_call.1} parent=0
    #allocation2 [shape = 'u8[2048]{0}', space=vmem, size = 0x800, scoped, tag = 'input window, operand 0, single buffered']
    #allocation3 [shape = 's32[1]{0}', space=sflag, size = 0x4, scoped, tag = 'scoped memory for tpu_custom_call.1']
    #allocation4 [shape = 's32[1]{0}', space=sflag, size = 0x4, scoped, tag = 'scoped memory for tpu_custom_call.1']
    #allocation5 [shape = 'u8[2048]{0}', space=vmem, size = 0x800, scoped, tag = 'output window, operand 0, single buffered']
    %8 = vsyncpa [#allocation3], 0
    %9 = vsyncpa [#allocation4], 0
    // Predicated region
    $region2: #{tpu_custom_call.1} parent=1 // pred_check
      _
    $region3: #{tpu_custom_call.1} parent=1 // pred_check_branch
      %11 = sbr.rel (0) target = $region5
    $region4: #{tpu_custom_call.1} parent=1 // pred_region
      %s13 = ssub.s32 64, 64
      %14 = vsyncadd [#allocation3], %s13
      %s16 = sshll.u32 [#allocation2], 4
      %s17 = int_to_ptr.vmem [resolvable:$true] %s16
      %19 = dma.hbm_to_vmem [thread:$0]  %s0, 64, %s17, [#allocation3]
    $region5: #{tpu_custom_call.1} parent=1 // pred_fallthru
      _
    // Predicated region
    $region6: #{tpu_custom_call.1} parent=1 // pred_check
      _
    $region7: #{tpu_custom_call.1} parent=1 // pred_check_branch
      %21 = sbr.rel (0) target = $region9
    $region8: #{tpu_custom_call.1} parent=1 // pred_region
      _
    $region9: #{tpu_custom_call.1} parent=1 // pred_fallthru
      _
    // Predicated region
    $region10: #{tpu_custom_call.1} parent=1 // pred_check
      _
    $region11: #{tpu_custom_call.1} parent=1 // pred_check_branch
      %23 = sbr.rel (0) target = $region13
    $region12: #{tpu_custom_call.1} parent=1 // pred_region
      _
    $region13: #{tpu_custom_call.1} parent=1 // pred_fallthru
      _
    // Predicated region
    $region14: #{tpu_custom_call.1} parent=1 // pred_check
      _
    $region15: #{tpu_custom_call.1} parent=1 // pred_check_branch
      %25 = sbr.rel (0) target = $region17
    $region16: #{tpu_custom_call.1} parent=1 // pred_region
      %26 = dma.done [#allocation3], 64
    $region17: #{tpu_custom_call.1} parent=1 // pred_fallthru
      _
    %v27 = vld [vmem:[#allocation2] sm:$0xf]
    %vm28 = vcmask 1043456
    %v29 = vsel %vm28, %v27, 0.0
    %30 = vadd.xlane.f32.xlu0 %v29
    %v31 = vpop.xlane.xlu0 %30
    %v32 = vmul.f32 %v31, 0.0078125
    %v33 = vsub.f32 %v27, %v32
    %v34 = vmul.f32 %v33, %v33
    %v35 = vsel %vm28, %v34, 0.0
    %36 = vadd.xlane.f32.xlu0 %v35
    %v37 = vpop.xlane.xlu0 %36
    %v38 = vmul.f32 %v37, 0.0078125
    %v39 = vadd.f32 %v38, 1e-05
    %v40 = vrsqrt.pop %v39
    %v41 = vmul.f32 %v33, %v40
    %v42 = vld [vmem:[%s1] sm:$0x1]
    %v43 = vld [vmem:[%s2] sm:$0x1]
    %v45 = vlaneseq
    %v46 = vshrl.u32 %v45, 7
    %v47 = vsub.s32 0, %v46
    %v48 = vrot.slane %v42, %v47
    %v50 = vmul.f32 %v41, %v48
    %v52 = vlaneseq
    %v53 = vshrl.u32 %v52, 7
    %v54 = vsub.s32 0, %v53
    %v55 = vrot.slane %v43, %v54
    %v57 = vadd.f32 %v50, %v55
    %58 = vst [vmem:[#allocation5] sm:$0xf] %v57
    // Predicated region
    $region18: #{tpu_custom_call.1} parent=1 // pred_check
      _
    $region19: #{tpu_custom_call.1} parent=1 // pred_check_branch
      %60 = sbr.rel (0) target = $region21
    $region20: #{tpu_custom_call.1} parent=1 // pred_region
      %s62 = ssub.s32 64, 64
      %63 = vsyncadd [#allocation4], %s62
      %s65 = sshll.u32 [#allocation5], 4
      %s66 = int_to_ptr.vmem [resolvable:$true] %s65
      %68 = dma.vmem_to_hbm [thread:$0]  %s66, 64, %s3, [#allocation4]
    $region21: #{tpu_custom_call.1} parent=1 // pred_fallthru
      _
    // Predicated region
    $region22: #{tpu_custom_call.1} parent=1 // pred_check
      _
    $region23: #{tpu_custom_call.1} parent=1 // pred_check_branch
      %70 = sbr.rel (0) target = $region25
    $region24: #{tpu_custom_call.1} parent=1 // pred_region
      %71 = dma.done [#allocation4], 64
    $region25: #{tpu_custom_call.1} parent=1 // pred_fallthru
      _
    %72 = vsyncpa [#allocation3], 1
    %73 = vsyncpa [#allocation4], 1

</llo_original>
